<compile_context>
chip_gen: v5e
topology: v5e:2x2
jax: 0.10.0
libtpu: 0.0.40
codegen_flags: <defaults>
</compile_context>

<pallas_src>
import functools
import math

import jax
import jax.numpy as jnp
from jax.experimental import pallas as pl
from jax.experimental.pallas import tpu as pltpu


# ----------------------------------------------------------------- helpers --

def _row_align(dtype):
    """Sublane alignment for the second-to-last block dim, by element size."""
    itemsize = jnp.dtype(dtype).itemsize
    return {4: 8, 2: 16, 1: 32}.get(itemsize, 8)


def _fold_rows_cols(shape):
    """Free, layout-preserving 2-D factorization with a lane-dense minor dim."""
    n = int(math.prod(shape)) if len(shape) else 1
    cols = 1
    for d in reversed(shape):
        cols *= int(d)
        if cols >= 128:
            break
    cols = max(cols, 1)
    rows = max(n // cols, 1)
    # Rebalance very wide minors (e.g. flat 1-D inputs) back toward ~512 lanes
    # so rows can actually be tiled/pipelined; only when it stays a x128.
    if cols % 128 == 0 and cols > 512:
        f = cols // 128
        for g in (4, 2, 1):
            if f % g == 0:
                rows *= f // g
                cols = 128 * g
                break
    return rows, cols


def _num_tensorcores():
    """Best-effort TensorCore count per chip (2 on megacore / v7x-class)."""
    try:
        kind = jax.devices()[0].device_kind.lower()
    except Exception:
        return 1
    if any(tag in kind for tag in ("v7", "tpu7", "v4", "v5p")):
        return 2
    return 1


# ----------------------------------------------------------------- kernels --

def _make_pass1_kernel(has_mask, rows, tile_rows, cols, steps, acc_rows, ragged):
    """Per part: max of |t - p| over valid elements, and valid count (int32)."""
    groups = tile_rows // acc_rows

    def kernel(*refs):
        if has_mask:
            t_ref, p_ref, m_ref = refs[:3]
            max_ref, cnt_ref, max_scr, cnt_scr = refs[3:7]
        else:
            t_ref, p_ref = refs[:2]
            m_ref = None
            max_ref, cnt_ref, max_scr, cnt_scr = refs[2:6]

        part = pl.program_id(0)
        step = pl.program_id(1)

        @pl.when(step == 0)
        def _():
            max_scr[...] = jnp.zeros_like(max_scr)
            cnt_scr[...] = jnp.zeros_like(cnt_scr)

        t = t_ref[...]
        p = p_ref[...]
        valid = t > 0
        if has_mask:
            valid = valid & (m_ref[...] > 0)
        if ragged:
            # Nominal (unclamped) block id: rows past `rows` (partial tail, or
            # a fully out-of-range clamped grid slot) are masked out.
            row0 = (part * steps + step) * tile_rows
            local = jax.lax.broadcasted_iota(jnp.int32, (tile_rows, cols), 0)
            valid = valid & (local < (rows - row0))

        d = jnp.abs(t.astype(jnp.float32) - p.astype(jnp.float32))
        d = jnp.where(valid, d, 0.0)            # OOB garbage/NaN -> 0 (neutral)
        ones = valid.astype(jnp.int32)

        if groups > 1:                          # fold row groups (pure VPU)
            d = jnp.max(d.reshape(groups, acc_rows, cols), axis=0)
            ones = jnp.sum(ones.reshape(groups, acc_rows, cols), axis=0)
        max_scr[...] = jnp.maximum(max_scr[...], d)
        cnt_scr[...] = cnt_scr[...] + ones

        # One cross-lane reduction per part, only at the last step.
        @pl.when(step == steps - 1)
        def _():
            max_ref[...] = jnp.max(max_scr[...]).reshape(1, 1, 1)
            cnt_ref[...] = jnp.sum(cnt_scr[...]).reshape(1, 1, 1)

    return kernel


def _make_pass2_kernel(has_mask, rows, tile_rows, cols, steps, acc_rows,
                       ragged, n_parts, threshold):
    """Per part: sum of berhu(|t - p|, delta) over valid elements."""
    groups = tile_rows // acc_rows

    def kernel(*refs):
        if has_mask:
            mx_ref, t_ref, p_ref, m_ref = refs[:4]
            sum_ref, sum_scr = refs[4:6]
        else:
            mx_ref, t_ref, p_ref = refs[:3]
            m_ref = None
            sum_ref, sum_scr = refs[3:5]

        part = pl.program_id(0)
        step = pl.program_id(1)

        @pl.when(step == 0)
        def _():
            sum_scr[...] = jnp.zeros_like(sum_scr)

        # Fused glue: global max over per-part partials, then delta,
        # 1/(2*delta), 2*delta^2 -- all cheap scalar-unit work.
        max_diff = mx_ref[0]
        for i in range(1, n_parts):
            max_diff = jnp.maximum(max_diff, mx_ref[i])
        delta = jnp.float32(threshold) * max_diff
        inv_2delta = jnp.float32(0.5) / delta    # multiply, not divide, per elem
        thresh2 = 2.0 * delta * delta

        t = t_ref[...]
        p = p_ref[...]
        valid = t > 0
        if has_mask:
            valid = valid & (m_ref[...] > 0)
        if ragged:
            row0 = (part * steps + step) * tile_rows
            local = jax.lax.broadcasted_iota(jnp.int32, (tile_rows, cols), 0)
            valid = valid & (local < (rows - row0))

        # Invalid elements forced to d = 0: part1 = 0 and part2 = 0 (delta^2 is
        # never > 2*delta^2 for delta > 0), so no trailing select is needed.
        # Both strict comparisons of the reference are preserved.
        d = jnp.where(valid,
                      jnp.abs(t.astype(jnp.float32) - p.astype(jnp.float32)),
                      0.0)
        part1 = jnp.where(d < delta, d, 0.0)
        sq = d * d + delta * delta
        part2 = jnp.where(sq > thresh2, sq, 0.0) * inv_2delta
        contrib = part1 + part2

        if groups > 1:
            contrib = jnp.sum(contrib.reshape(groups, acc_rows, cols), axis=0)
        sum_scr[...] = sum_scr[...] + contrib

        @pl.when(step == steps - 1)
        def _():
            sum_ref[...] = jnp.sum(sum_scr[...]).reshape(1, 1, 1)

    return kernel


# ----------------------------------------------------------------- wrapper --

@functools.partial(jax.jit, static_argnames=("threshold", "max_block_elems"))
def berhu_loss(target, pred, mask=None, *, threshold=0.2,
               max_block_elems=128 * 1024):
    assert target.shape == pred.shape, "inconsistent dimensions"
    if mask is not None:
        assert mask.shape == target.shape, "inconsistent dimensions"

    has_mask = mask is not None
    if has_mask and mask.dtype == jnp.bool_:
        mask = mask.astype(jnp.int8)     # avoid 1-bit loads; still 1 B/elem

    # Free (layout-preserving) lane-dense 2-D view.
    rows, cols = _fold_rows_cols(target.shape)
    t2d = target.reshape(rows, cols)
    p2d = pred.reshape(rows, cols)
    inputs = [t2d, p2d]
    if has_mask:
        inputs.append(mask.reshape(rows, cols))   # original (narrow) dtype

    # Sublane alignment must satisfy every streamed dtype (f32:8, bf16:16, i8:32).
    align = max(_row_align(target.dtype), _row_align(pred.dtype))
    if has_mask:
        align = max(align, _row_align(mask.dtype))

    # Tile selection: at most ~max_block_elems per input block, but also at
    # least MIN_BLOCKS blocks when rows allow (pipelining / dual-TC streaming).
    MIN_BLOCKS = 8
    cap_rows = max(align, (max_block_elems // cols) // align * align)
    if rows <= align:
        tile_rows = rows                         # single full-extent block
    else:
        per_block = -(-rows // MIN_BLOCKS)
        per_block = -(-per_block // align) * align
        tile_rows = max(align, min(cap_rows, per_block))
    total_blocks = -(-rows // tile_rows)
    acc_rows = 8 if tile_rows % 8 == 0 else tile_rows

    # Generation-aware parallel split: 2 only on dual-TensorCore chips.
    n_parts = max(1, min(_num_tensorcores(), total_blocks))
    steps = -(-total_blocks // n_parts)
    grid = (n_parts, steps)
    ragged = (total_blocks * tile_rows != rows) or (n_parts * steps != total_blocks)
    last_blk = total_blocks - 1

    # Clamp so an out-of-range grid slot still issues an in-bounds DMA; its
    # rows are masked out in-kernel via the nominal (unclamped) row offset.
    def data_map(p, s):
        return (jnp.minimum(p * steps + s, last_blk), 0)

    tile_spec = pl.BlockSpec((tile_rows, cols), data_map)
    part_out_spec = pl.BlockSpec((1, 1, 1), lambda p, s: (p, 0, 0))
    acc_f32 = pltpu.VMEM((acc_rows, cols), jnp.float32)
    acc_i32 = pltpu.VMEM((acc_rows, cols), jnp.int32)
    params = pltpu.CompilerParams(dimension_semantics=("parallel", "arbitrary"))

    # ---- pass 1: masked max of |target - pred| and valid count (int32) -----
    max_part, cnt_part = pl.pallas_call(
        _make_pass1_kernel(has_mask, rows, tile_rows, cols, steps, acc_rows,
                           ragged),
        out_shape=(jax.ShapeDtypeStruct((n_parts, 1, 1), jnp.float32),
                   jax.ShapeDtypeStruct((n_parts, 1, 1), jnp.int32)),
        grid=grid,
        in_specs=[tile_spec] * len(inputs),
        out_specs=(part_out_spec, part_out_spec),
        scratch_shapes=[acc_f32, acc_i32],
        compiler_params=params,
    )(*inputs)

    # ---- pass 2: sum of berhu terms (delta computed in-kernel from SMEM) ---
    sum_part = pl.pallas_call(
        _make_pass2_kernel(has_mask, rows, tile_rows, cols, steps, acc_rows,
                           ragged, n_parts, float(threshold)),
        out_shape=jax.ShapeDtypeStruct((n_parts, 1, 1), jnp.float32),
        grid=grid,
        in_specs=[pl.BlockSpec(memory_space=pltpu.SMEM)]
                 + [tile_spec] * len(inputs),
        out_specs=part_out_spec,
        scratch_shapes=[acc_f32],
        compiler_params=params,
    )(max_part.reshape(n_parts), *inputs)

    count = jnp.sum(cnt_part).astype(jnp.float32)
    return jnp.sum(sum_part) / count


# --------------------------------------------------------------- reference --

def berhu_loss_ref(target, pred, mask=None, threshold=0.2):
    valid = target > 0
    if mask is not None:
        valid = valid & (mask > 0)
    d = jnp.abs(target.astype(jnp.float32) - pred.astype(jnp.float32))
    delta = threshold * jnp.max(jnp.where(valid, d, 0.0))
    part1 = jnp.where(d < delta, d, 0.0)
    sq = d * d + delta * delta
    part2 = jnp.where(sq > 2.0 * delta * delta, sq, 0.0) / (2.0 * delta)
    val = jnp.where(valid, part1 + part2, 0.0)
    return jnp.sum(val) / jnp.sum(valid)


if __name__ == "__main__":
    key = jax.random.PRNGKey(0)
    k1, k2, k3, k4 = jax.random.split(key, 4)

    shape = (2, 4, 16, 16)   # NCHW, like the PyTorch usage
    # Some target entries <= 0 so the validity mask is exercised.
    target = jax.random.uniform(k1, shape, jnp.float32, minval=-0.5, maxval=2.0)
    pred = jax.random.uniform(k2, shape, jnp.float32, minval=0.0, maxval=2.0)
    mask = (jax.random.uniform(k3, shape, jnp.float32) > 0.3).astype(jnp.int8)

    # 1) no-mask path; lane-dense view (rows=8, cols=256), single block.
    out = jax.block_until_ready(berhu_loss(target, pred, threshold=0.2))
    ref = berhu_loss_ref(target, pred, threshold=0.2)
    assert jnp.allclose(out, ref, rtol=1e-4, atol=1e-5), (out, ref)

    # 2) explicit mask streamed in its narrow int8 dtype (no f32 upcast copy).
    out_m = jax.block_until_ready(berhu_loss(target, pred, mask, threshold=0.2))
    ref_m = berhu_loss_ref(target, pred, mask, threshold=0.2)
    assert jnp.allclose(out_m, ref_m, rtol=1e-4, atol=1e-5), (out_m, ref_m)

    # 3) bf16 inputs streamed as bf16, upcast in-kernel.
    tb, pb = target.astype(jnp.bfloat16), pred.astype(jnp.bfloat16)
    out_b = jax.block_until_ready(berhu_loss(tb, pb, threshold=0.2))
    ref_b = berhu_loss_ref(tb.astype(jnp.float32), pb.astype(jnp.float32),
                           threshold=0.2)
    assert jnp.allclose(out_b, ref_b, rtol=1e-3, atol=1e-4), (out_b, ref_b)

    # 4) multi-block grid with ragged row tail + int8 mask (rows=40, tile=32).
    shape2 = (5, 8, 16, 16)
    t2 = jax.random.uniform(k4, shape2, jnp.float32, minval=-0.5, maxval=2.0)
    p2 = jax.random.uniform(k1, shape2, jnp.float32, minval=0.0, maxval=2.0)
    m2 = (jax.random.uniform(k2, shape2, jnp.float32) > 0.3).astype(jnp.int8)
    out2 = jax.block_until_ready(berhu_loss(t2, p2, m2, threshold=0.2))
    ref2 = berhu_loss_ref(t2, p2, m2, threshold=0.2)
    assert jnp.allclose(out2, ref2, rtol=1e-4, atol=1e-5), (out2, ref2)

    # 5) force many small tiles: multi-step pipeline (and 2-way parallel on
    #    dual-TensorCore chips), exact block cover (no ragged tail).
    shape3 = (8, 8, 16, 16)
    t3 = jax.random.uniform(k3, shape3, jnp.float32, minval=-0.5, maxval=2.0)
    p3 = jax.random.uniform(k4, shape3, jnp.float32, minval=0.0, maxval=2.0)
    out3 = jax.block_until_ready(
        berhu_loss(t3, p3, threshold=0.2, max_block_elems=8 * 256))
    ref3 = berhu_loss_ref(t3, p3, threshold=0.2)
    assert jnp.allclose(out3, ref3, rtol=1e-4, atol=1e-5), (out3, ref3)

    print("KERNEL_OK")
</pallas_src>

<mosaic_0001>
module attributes {stable_mosaic.version = 11 : i64} {
  func.func @kernel(%arg0: i32, %arg1: i32, %arg2: memref<1xf32, #tpu.memory_space<smem>>, %arg3: memref<8x256xf32, #tpu.memory_space<vmem>>, %arg4: memref<8x256xf32, #tpu.memory_space<vmem>>, %arg5: memref<1x1x1xf32, #tpu.memory_space<vmem>>, %arg6: memref<8x256xf32, #tpu.memory_space<vmem>>) attributes {dimension_semantics = [#tpu.dimension_semantics<parallel>, #tpu.dimension_semantics<arbitrary>], iteration_bounds = array<i64: 1, 1>, scalar_prefetch = 0 : i64, scratch_operands = 1 : i64, tpu.core_type = #tpu.core_type<tc>, window_params = [{transform_indices = @transform_0, window_bounds = array<i64: 1>}, {transform_indices = @transform_1, window_bounds = array<i64: 8, 256>}, {transform_indices = @transform_2, window_bounds = array<i64: 8, 256>}, {transform_indices = @transform_3, window_bounds = array<i64: 1, 1, 1>}]} {
    %c0_i32 = arith.constant 0 : i32
    %0 = arith.cmpi eq, %arg1, %c0_i32 : i32
    %1 = arith.extui %0 : i1 to i32
    %c0_i32_0 = arith.constant 0 : i32
    %2 = arith.cmpi ne, %1, %c0_i32_0 : i32
    scf.if %2 {
      %cst_17 = arith.constant 0.000000e+00 : f32
      %37 = vector.broadcast %cst_17 : f32 to vector<8x256xf32>
      %c0_18 = arith.constant 0 : index
      %c0_19 = arith.constant 0 : index
      %38 = vector.load %arg6[%c0_18, %c0_19] : memref<8x256xf32, #tpu.memory_space<vmem>>, vector<8x256xf32>
      tpu.vector_store %arg6[%c0_18, %c0_19], %37 {strides = array<i32>} : memref<8x256xf32, #tpu.memory_space<vmem>>, vector<8x256xf32>,
    } else {
    }
    %c0 = arith.constant 0 : index
    %3 = memref.load %arg2[%c0] : memref<1xf32, #tpu.memory_space<smem>>
    %cst = arith.constant 2.000000e-01 : f32
    %4 = arith.mulf %cst, %3 : f32
    %cst_1 = arith.constant 5.000000e-01 : f32
    %5 = arith.divf %cst_1, %4 : f32
    %cst_2 = arith.constant 2.000000e+00 : f32
    %6 = arith.mulf %cst_2, %4 : f32
    %7 = arith.mulf %6, %4 : f32
    %c0_3 = arith.constant 0 : index
    %c0_4 = arith.constant 0 : index
    %8 = vector.load %arg3[%c0_3, %c0_4] : memref<8x256xf32, #tpu.memory_space<vmem>>, vector<8x256xf32>
    %c0_5 = arith.constant 0 : index
    %c0_6 = arith.constant 0 : index
    %9 = vector.load %arg4[%c0_5, %c0_6] : memref<8x256xf32, #tpu.memory_space<vmem>>, vector<8x256xf32>
    %cst_7 = arith.constant 0.000000e+00 : f32
    %10 = vector.broadcast %cst_7 : f32 to vector<8x256xf32>
    %11 = arith.cmpf ogt, %8, %10 : vector<8x256xf32>
    %12 = arith.subf %8, %9 : vector<8x256xf32>
    %13 = math.absf %12 : vector<8x256xf32>
    %cst_8 = arith.constant 0.000000e+00 : f32
    %14 = vector.broadcast %cst_8 : f32 to vector<8x256xf32>
    %15 = arith.select %11, %13, %14 : vector<8x256xi1>, vector<8x256xf32>
    %16 = vector.broadcast %4 : f32 to vector<8x256xf32>
    %17 = arith.cmpf olt, %15, %16 : vector<8x256xf32>
    %cst_9 = arith.constant 0.000000e+00 : f32
    %18 = vector.broadcast %cst_9 : f32 to vector<8x256xf32>
    %19 = arith.select %17, %15, %18 : vector<8x256xi1>, vector<8x256xf32>
    %20 = arith.mulf %15, %15 : vector<8x256xf32>
    %21 = arith.mulf %4, %4 : f32
    %22 = vector.broadcast %21 : f32 to vector<8x256xf32>
    %23 = arith.addf %20, %22 : vector<8x256xf32>
    %24 = vector.broadcast %7 : f32 to vector<8x256xf32>
    %25 = arith.cmpf ogt, %23, %24 : vector<8x256xf32>
    %cst_10 = arith.constant 0.000000e+00 : f32
    %26 = vector.broadcast %cst_10 : f32 to vector<8x256xf32>
    %27 = arith.select %25, %23, %26 : vector<8x256xi1>, vector<8x256xf32>
    %28 = vector.broadcast %5 : f32 to vector<8x256xf32>
    %29 = arith.mulf %27, %28 : vector<8x256xf32>
    %30 = arith.addf %19, %29 : vector<8x256xf32>
    %c0_11 = arith.constant 0 : index
    %c0_12 = arith.constant 0 : index
    %31 = vector.load %arg6[%c0_11, %c0_12] : memref<8x256xf32, #tpu.memory_space<vmem>>, vector<8x256xf32>
    %32 = arith.addf %31, %30 : vector<8x256xf32>
    %c0_13 = arith.constant 0 : index
    %c0_14 = arith.constant 0 : index
    %33 = vector.load %arg6[%c0_13, %c0_14] : memref<8x256xf32, #tpu.memory_space<vmem>>, vector<8x256xf32>
    tpu.vector_store %arg6[%c0_13, %c0_14], %32 {strides = array<i32>} : memref<8x256xf32, #tpu.memory_space<vmem>>, vector<8x256xf32>,
    %c0_i32_15 = arith.constant 0 : i32
    %34 = arith.cmpi eq, %arg1, %c0_i32_15 : i32
    %35 = arith.extui %34 : i1 to i32
    %c0_i32_16 = arith.constant 0 : i32
    %36 = arith.cmpi ne, %35, %c0_i32_16 : i32
    scf.if %36 {
      %c0_17 = arith.constant 0 : index
      %c0_18 = arith.constant 0 : index
      %37 = vector.load %arg6[%c0_17, %c0_18] : memref<8x256xf32, #tpu.memory_space<vmem>>, vector<8x256xf32>
      %38 = vector.shape_cast %37 : vector<8x256xf32> to vector<1x8x256xf32>
      %cst_19 = arith.constant dense<0.000000e+00> : vector<1xf32>
      %39 = vector.multi_reduction <add>, %38, %cst_19 [1, 2] : vector<1x8x256xf32> to vector<1xf32>
      %40 = vector.shape_cast %39 : vector<1xf32> to vector<1x1x1xf32>
      %41 = vector.extract %40[0, 0, 0] : f32 from vector<1x1x1xf32>
      %42 = vector.broadcast %41 : f32 to vector<1x1x1xf32>
      %c0_20 = arith.constant 0 : index
      %c0_21 = arith.constant 0 : index
      %c0_22 = arith.constant 0 : index
      %43 = vector.load %arg5[%c0_20, %c0_21, %c0_22] : memref<1x1x1xf32, #tpu.memory_space<vmem>>, vector<1x1x1xf32>
      tpu.vector_store %arg5[%c0_20, %c0_21, %c0_22], %42 {strides = array<i32>} : memref<1x1x1xf32, #tpu.memory_space<vmem>>, vector<1x1x1xf32>,
    } else {
    }
    return
  }
  func.func @transform_0(%arg0: i32, %arg1: i32) -> i32 {
    %c0_i32 = arith.constant 0 : i32
    %c0_i32_0 = arith.constant 0 : i32
    return %c0_i32 : i32
  }
  func.func @transform_1(%arg0: i32, %arg1: i32) -> (i32, i32) {
    %c1_i32 = arith.constant 1 : i32
    %0 = arith.muli %arg0, %c1_i32 : i32
    %1 = arith.addi %0, %arg1 : i32
    %c0_i32 = arith.constant 0 : i32
    %2 = arith.minsi %1, %c0_i32 : i32
    %c0_i32_0 = arith.constant 0 : i32
    %c0_i32_1 = arith.constant 0 : i32
    return %2, %c0_i32_0 : i32, i32
  }
  func.func @transform_2(%arg0: i32, %arg1: i32) -> (i32, i32) {
    %c1_i32 = arith.constant 1 : i32
    %0 = arith.muli %arg0, %c1_i32 : i32
    %1 = arith.addi %0, %arg1 : i32
    %c0_i32 = arith.constant 0 : i32
    %2 = arith.minsi %1, %c0_i32 : i32
    %c0_i32_0 = arith.constant 0 : i32
    %c0_i32_1 = arith.constant 0 : i32
    return %2, %c0_i32_0 : i32, i32
  }
  func.func @transform_3(%arg0: i32, %arg1: i32) -> (i32, i32, i32) {
    %c0_i32 = arith.constant 0 : i32
    %c0_i32_0 = arith.constant 0 : i32
    %c0_i32_1 = arith.constant 0 : i32
    return %arg0, %c0_i32, %c0_i32_0 : i32, i32, i32
  }
}

module attributes {stable_mosaic.version = 11 : i64} {
  func.func @kernel(%arg0: i32, %arg1: i32, %arg2: memref<8x256xf32, #tpu.memory_space<vmem>>, %arg3: memref<8x256xf32, #tpu.memory_space<vmem>>, %arg4: memref<1x1x1xf32, #tpu.memory_space<vmem>>, %arg5: memref<1x1x1xi32, #tpu.memory_space<vmem>>, %arg6: memref<8x256xf32, #tpu.memory_space<vmem>>, %arg7: memref<8x256xi32, #tpu.memory_space<vmem>>) attributes {dimension_semantics = [#tpu.dimension_semantics<parallel>, #tpu.dimension_semantics<arbitrary>], iteration_bounds = array<i64: 1, 1>, scalar_prefetch = 0 : i64, scratch_operands = 2 : i64, tpu.core_type = #tpu.core_type<tc>, window_params = [{transform_indices = @transform_0, window_bounds = array<i64: 8, 256>}, {transform_indices = @transform_1, window_bounds = array<i64: 8, 256>}, {transform_indices = @transform_2, window_bounds = array<i64: 1, 1, 1>}, {transform_indices = @transform_3, window_bounds = array<i64: 1, 1, 1>}]} {
    %c0_i32 = arith.constant 0 : i32
    %0 = arith.cmpi eq, %arg1, %c0_i32 : i32
    %1 = arith.extui %0 : i1 to i32
    %c0_i32_0 = arith.constant 0 : i32
    %2 = arith.cmpi ne, %1, %c0_i32_0 : i32
    scf.if %2 {
      %cst_15 = arith.constant 0.000000e+00 : f32
      %21 = vector.broadcast %cst_15 : f32 to vector<8x256xf32>
      %c0_16 = arith.constant 0 : index
      %c0_17 = arith.constant 0 : index
      %22 = vector.load %arg6[%c0_16, %c0_17] : memref<8x256xf32, #tpu.memory_space<vmem>>, vector<8x256xf32>
      tpu.vector_store %arg6[%c0_16, %c0_17], %21 {strides = array<i32>} : memref<8x256xf32, #tpu.memory_space<vmem>>, vector<8x256xf32>,
      %c0_i32_18 = arith.constant 0 : i32
      %23 = vector.broadcast %c0_i32_18 : i32 to vector<8x256xi32>
      %c0_19 = arith.constant 0 : index
      %c0_20 = arith.constant 0 : index
      %24 = vector.load %arg7[%c0_19, %c0_20] : memref<8x256xi32, #tpu.memory_space<vmem>>, vector<8x256xi32>
      tpu.vector_store %arg7[%c0_19, %c0_20], %23 {strides = array<i32>} : memref<8x256xi32, #tpu.memory_space<vmem>>, vector<8x256xi32>,
    } else {
    }
    %c0 = arith.constant 0 : index
    %c0_1 = arith.constant 0 : index
    %3 = vector.load %arg2[%c0, %c0_1] : memref<8x256xf32, #tpu.memory_space<vmem>>, vector<8x256xf32>
    %c0_2 = arith.constant 0 : index
    %c0_3 = arith.constant 0 : index
    %4 = vector.load %arg3[%c0_2, %c0_3] : memref<8x256xf32, #tpu.memory_space<vmem>>, vector<8x256xf32>
    %cst = arith.constant 0.000000e+00 : f32
    %5 = vector.broadcast %cst : f32 to vector<8x256xf32>
    %6 = arith.cmpf ogt, %3, %5 : vector<8x256xf32>
    %7 = arith.subf %3, %4 : vector<8x256xf32>
    %8 = math.absf %7 : vector<8x256xf32>
    %cst_4 = arith.constant 0.000000e+00 : f32
    %9 = vector.broadcast %cst_4 : f32 to vector<8x256xf32>
    %10 = arith.select %6, %8, %9 : vector<8x256xi1>, vector<8x256xf32>
    %11 = arith.extui %6 : vector<8x256xi1> to vector<8x256xi32>
    %c0_5 = arith.constant 0 : index
    %c0_6 = arith.constant 0 : index
    %12 = vector.load %arg6[%c0_5, %c0_6] : memref<8x256xf32, #tpu.memory_space<vmem>>, vector<8x256xf32>
    %13 = arith.maximumf %12, %10 : vector<8x256xf32>
    %c0_7 = arith.constant 0 : index
    %c0_8 = arith.constant 0 : index
    %14 = vector.load %arg6[%c0_7, %c0_8] : memref<8x256xf32, #tpu.memory_space<vmem>>, vector<8x256xf32>
    tpu.vector_store %arg6[%c0_7, %c0_8], %13 {strides = array<i32>} : memref<8x256xf32, #tpu.memory_space<vmem>>, vector<8x256xf32>,
    %c0_9 = arith.constant 0 : index
    %c0_10 = arith.constant 0 : index
    %15 = vector.load %arg7[%c0_9, %c0_10] : memref<8x256xi32, #tpu.memory_space<vmem>>, vector<8x256xi32>
    %16 = arith.addi %15, %11 : vector<8x256xi32>
    %c0_11 = arith.constant 0 : index
    %c0_12 = arith.constant 0 : index
    %17 = vector.load %arg7[%c0_11, %c0_12] : memref<8x256xi32, #tpu.memory_space<vmem>>, vector<8x256xi32>
    tpu.vector_store %arg7[%c0_11, %c0_12], %16 {strides = array<i32>} : memref<8x256xi32, #tpu.memory_space<vmem>>, vector<8x256xi32>,
    %c0_i32_13 = arith.constant 0 : i32
    %18 = arith.cmpi eq, %arg1, %c0_i32_13 : i32
    %19 = arith.extui %18 : i1 to i32
    %c0_i32_14 = arith.constant 0 : i32
    %20 = arith.cmpi ne, %19, %c0_i32_14 : i32
    scf.if %20 {
      %c0_15 = arith.constant 0 : index
      %c0_16 = arith.constant 0 : index
      %21 = vector.load %arg6[%c0_15, %c0_16] : memref<8x256xf32, #tpu.memory_space<vmem>>, vector<8x256xf32>
      %22 = vector.shape_cast %21 : vector<8x256xf32> to vector<1x8x256xf32>
      %cst_17 = arith.constant dense<0xFF800000> : vector<1xf32>
      %23 = vector.multi_reduction <maximumf>, %22, %cst_17 [1, 2] : vector<1x8x256xf32> to vector<1xf32>
      %24 = vector.shape_cast %23 : vector<1xf32> to vector<1x1x1xf32>
      %25 = vector.extract %24[0, 0, 0] : f32 from vector<1x1x1xf32>
      %26 = vector.broadcast %25 : f32 to vector<1x1x1xf32>
      %c0_18 = arith.constant 0 : index
      %c0_19 = arith.constant 0 : index
      %c0_20 = arith.constant 0 : index
      %27 = vector.load %arg4[%c0_18, %c0_19, %c0_20] : memref<1x1x1xf32, #tpu.memory_space<vmem>>, vector<1x1x1xf32>
      tpu.vector_store %arg4[%c0_18, %c0_19, %c0_20], %26 {strides = array<i32>} : memref<1x1x1xf32, #tpu.memory_space<vmem>>, vector<1x1x1xf32>,
      %c0_21 = arith.constant 0 : index
      %c0_22 = arith.constant 0 : index
      %28 = vector.load %arg7[%c0_21, %c0_22] : memref<8x256xi32, #tpu.memory_space<vmem>>, vector<8x256xi32>
      %29 = vector.shape_cast %28 : vector<8x256xi32> to vector<1x8x256xi32>
      %cst_23 = arith.constant dense<0> : vector<1xi32>
      %30 = vector.multi_reduction <add>, %29, %cst_23 [1, 2] : vector<1x8x256xi32> to vector<1xi32>
      %31 = vector.shape_cast %30 : vector<1xi32> to vector<1x1x1xi32>
      %32 = vector.extract %31[0, 0, 0] : i32 from vector<1x1x1xi32>
      %33 = vector.broadcast %32 : i32 to vector<1x1x1xi32>
      %c0_24 = arith.constant 0 : index
      %c0_25 = arith.constant 0 : index
      %c0_26 = arith.constant 0 : index
      %34 = vector.load %arg5[%c0_24, %c0_25, %c0_26] : memref<1x1x1xi32, #tpu.memory_space<vmem>>, vector<1x1x1xi32>
      tpu.vector_store %arg5[%c0_24, %c0_25, %c0_26], %33 {strides = array<i32>} : memref<1x1x1xi32, #tpu.memory_space<vmem>>, vector<1x1x1xi32>,
    } else {
    }
    return
  }
  func.func @transform_0(%arg0: i32, %arg1: i32) -> (i32, i32) {
    %c1_i32 = arith.constant 1 : i32
    %0 = arith.muli %arg0, %c1_i32 : i32
    %1 = arith.addi %0, %arg1 : i32
    %c0_i32 = arith.constant 0 : i32
    %2 = arith.minsi %1, %c0_i32 : i32
    %c0_i32_0 = arith.constant 0 : i32
    %c0_i32_1 = arith.constant 0 : i32
    return %2, %c0_i32_0 : i32, i32
  }
  func.func @transform_1(%arg0: i32, %arg1: i32) -> (i32, i32) {
    %c1_i32 = arith.constant 1 : i32
    %0 = arith.muli %arg0, %c1_i32 : i32
    %1 = arith.addi %0, %arg1 : i32
    %c0_i32 = arith.constant 0 : i32
    %2 = arith.minsi %1, %c0_i32 : i32
    %c0_i32_0 = arith.constant 0 : i32
    %c0_i32_1 = arith.constant 0 : i32
    return %2, %c0_i32_0 : i32, i32
  }
  func.func @transform_2(%arg0: i32, %arg1: i32) -> (i32, i32, i32) {
    %c0_i32 = arith.constant 0 : i32
    %c0_i32_0 = arith.constant 0 : i32
    %c0_i32_1 = arith.constant 0 : i32
    return %arg0, %c0_i32, %c0_i32_0 : i32, i32, i32
  }
  func.func @transform_3(%arg0: i32, %arg1: i32) -> (i32, i32, i32) {
    %c0_i32 = arith.constant 0 : i32
    %c0_i32_0 = arith.constant 0 : i32
    %c0_i32_1 = arith.constant 0 : i32
    return %arg0, %c0_i32, %c0_i32_0 : i32, i32, i32
  }
}

</mosaic_0001>

<llo_original>
// kernel: berhu_loss.3
$region0: #{berhu_loss.3}
  #allocation0 [shape = 'u32[]', space=smem, size = 0x4, offset = 0x4, fixed_abs, tag = 'smem constant byte address 0x4 - core index']
  #allocation1 [shape = 'u32[72,128]{1,0:T(1,128)}', space=vmem, size = 0x9000, scoped, tag = 'internal scratch']
  #allocation2 [shape = 'f32[8,256]{1,0:T(8,128)}', space=vmem, size = 0x2000, scoped, tag = 'scratch operand']
  #allocation3 [shape = 'f32[1]{0:T(128)S(6)}', space=smem, size = 0x200, scoped, tag = 'scoped memory for berhu_loss.3']
  %s0 = inlined_call_operand.<no memory space> [shape: f32[1], index: 0, kind: input, shape index: {}]
  %s1 = inlined_call_operand.vmem [shape: f32[8,256], index: 1, kind: input, shape index: {}]
  %s2 = inlined_call_operand.vmem [shape: f32[8,256], index: 2, kind: input, shape index: {}]
  %s3 = inlined_call_operand.hbm [shape: f32[1,1,1], index: 3, kind: output, shape index: {}]
  %s4 = sld [smem:[#allocation0]]
  $region30: #{berhu_loss.3} parent=0
    _
  %s6 = ssub.s32 1, %s4
  %s7 = scalar_select 0, %s6, %s4
  %8 = sst [smem:[#allocation3]] %s0
  $region1: #{berhu_loss.3} parent=0
    #allocation4 [shape = 'u8[512]{0}', space=vmem, size = 0x400, scoped, tag = 'output window, operand 0, single buffered']
    #allocation5 [shape = 's32[1]{0}', space=sflag, size = 0x4, scoped, tag = 'scoped memory for berhu_loss.3']
    %9 = vsyncpa [#allocation5], 0
    // Predicated region
    $region2: #{berhu_loss.3} parent=1 // pred_check
      _
    $region3: #{berhu_loss.3} parent=1 // pred_check_branch
      %11 = sbr.rel (0) target = $region5
    $region4: #{berhu_loss.3} parent=1 // pred_region
      _
    $region5: #{berhu_loss.3} parent=1 // pred_fallthru
      _
    // Predicated region
    $region6: #{berhu_loss.3} parent=1 // pred_check
      _
    $region7: #{berhu_loss.3} parent=1 // pred_check_branch
      %13 = sbr.rel (0) target = $region9
    $region8: #{berhu_loss.3} parent=1 // pred_region
      %s14 = sadd.s32 0, 0
      %p15 = scmp.lt.s32.totalorder %s14, 0
      %s16 = scalar_select %p15, %s14, 0
      %p17 = scmp.lt.s32.totalorder %s16, 0
      %s18 = scalar_select %p17, %s16, 0
      %s19 = smul.addr %s18, 2
      %s20 = smul.addr %s19, 8
      %s21 = scalar_lea.vmem %s1, %s20
      %s22 = sadd.s32 0, 0
      %p23 = scmp.lt.s32.totalorder %s22, 0
      %s24 = scalar_select %p23, %s22, 0
    $region9: #{berhu_loss.3} parent=1 // pred_fallthru
      _
    // Predicated region
    $region10: #{berhu_loss.3} parent=1 // pred_check
      _
    $region11: #{berhu_loss.3} parent=1 // pred_check_branch
      %26 = sbr.rel (0) target = $region13
    $region12: #{berhu_loss.3} parent=1 // pred_region
      %s27 = sadd.s32 0, 0
      %p28 = scmp.lt.s32.totalorder %s27, 0
      %s29 = scalar_select %p28, %s27, 0
      %p30 = scmp.lt.s32.totalorder %s29, 0
      %s31 = scalar_select %p30, %s29, 0
      %s32 = smul.addr %s31, 2
      %s33 = smul.addr %s32, 8
      %s34 = scalar_lea.vmem %s2, %s33
      %s35 = sadd.s32 0, 0
      %p36 = scmp.lt.s32.totalorder %s35, 0
      %s37 = scalar_select %p36, %s35, 0
    $region13: #{berhu_loss.3} parent=1 // pred_fallthru
      _
    %s38 = sadd.s32 0, 0
    %p39 = scmp.lt.s32.totalorder %s38, 0
    %s40 = scalar_select %p39, %s38, 0
    %p41 = scmp.lt.s32.totalorder %s40, 0
    %s42 = scalar_select %p41, %s40, 0
    %s43 = smul.addr %s42, 2
    %s44 = smul.addr %s43, 8
    %s45 = scalar_lea.vmem %s1, %s44
    %s46 = sadd.s32 0, 0
    %p47 = scmp.lt.s32.totalorder %s46, 0
    %s48 = scalar_select %p47, %s46, 0
    %p49 = scmp.lt.s32.totalorder %s48, 0
    %s50 = scalar_select %p49, %s48, 0
    %s51 = smul.addr %s50, 2
    %s52 = smul.addr %s51, 8
    %s53 = scalar_lea.vmem %s2, %s52
    %s54 = sadd.s32 0, 0
    %p55 = scmp.lt.s32.totalorder %s54, 0
    %s56 = scalar_select %p55, %s54, 0
    %p57 = scmp.lt.s32.totalorder %s56, 0
    %s58 = scalar_select %p57, %s56, 0
    %s59 = smul.addr %s58, 2
    %s60 = smul.addr %s59, 8
    %s61 = scalar_lea.vmem %s1, %s60
    %s62 = sadd.s32 0, 0
    %p63 = scmp.lt.s32.totalorder %s62, 0
    %s64 = scalar_select %p63, %s62, 0
    %s65 = sadd.s32 0, 0
    %p66 = scmp.lt.s32.totalorder %s65, 0
    %s67 = scalar_select %p66, %s65, 0
    %p68 = scmp.lt.s32.totalorder %s67, 0
    %s69 = scalar_select %p68, %s67, 0
    %s70 = smul.addr %s69, 2
    %s71 = smul.addr %s70, 8
    %s72 = scalar_lea.vmem %s2, %s71
    %s73 = sadd.s32 0, 0
    %p74 = scmp.lt.s32.totalorder %s73, 0
    %s75 = scalar_select %p74, %s73, 0
    %p76 = scmp.eq.s32.totalorder 0, 0
    // Predicated region
    $region14: #{berhu_loss.3} parent=1 // pred_check
      %p77 = pneg %p76
    $region15: #{berhu_loss.3} parent=1 // pred_check_branch
      %79 = sbr.rel (%p77) target = $region17
    $region16: #{berhu_loss.3} parent=1 // pred_region
      %80 = vst [vmem:[#allocation2] sm:$0xff] 0.0
      %81 = vst [vmem:[#allocation2 + $0x8] sm:$0xff] 0.0
    $region17: #{berhu_loss.3} parent=1 // pred_fallthru
      _
    %s82 = sld [smem:[#allocation3]]
    %s83 = smul.f32 %s82, 0.2
    %v84 = vstv %s83
    %v85 = vrcp.pop %v84
    %v86 = vmul.f32 %v84, %v85
    %v87 = vsub.f32 1.0, %v86
    %v88 = vmul.f32 %v85, %v87
    %v89 = vadd.f32 %v85, %v88
    %vm90 = vweird.f32 %v84
    %vm91 = vweird.f32 %v85
    %vm92 = vmor %vm90, %vm91
    %v93 = vsel %vm92, %v85, %v89
    %v94 = vand.u32 2147483647, %v84
    %vm95 = vcmp.eq.f32.partialorder %v94, 8.507059e+37
    %v96 = vand.u32 %v84, 2147483648
    %v97 = vor.u32 1.1754944e-38, %v96
    %v98 = vsel %vm95, %v97, %v93
    %s99 = vtos %v98
    %s100 = smul.f32 0.5, %s99
    %s101 = smul.f32 %s83, 2.0
    %s102 = smul.f32 %s101, %s83
    %v103 = vld [vmem:[%s61] sm:$0xff]
    %v104 = vld [vmem:[%s61 + $0x8] sm:$0xff]
    %v105 = vld [vmem:[%s72] sm:$0xff]
    %v106 = vld [vmem:[%s72 + $0x8] sm:$0xff]
    %vm107 = vcmp.gt.f32.partialorder %v103, 0.0
    %vm108 = vcmp.gt.f32.partialorder %v104, 0.0
    %v109 = vsub.f32 %v103, %v105
    %v110 = vsub.f32 %v104, %v106
    %v111 = vand.u32 2147483647, %v109
    %v112 = vand.u32 2147483647, %v110
    %v113 = vsel %vm107, %v111, 0.0
    %v114 = vsel %vm108, %v112, 0.0
    %v115 = vstv %s83
    %vm116 = vcmp.lt.f32.partialorder %v113, %v115
    %vm117 = vcmp.lt.f32.partialorder %v114, %v115
    %v118 = vsel %vm116, %v113, 0.0
    %v119 = vsel %vm117, %v114, 0.0
    %v120 = vmul.f32 %v113, %v113
    %v121 = vmul.f32 %v114, %v114
    %s122 = smul.f32 %s83, %s83
    %v123 = vstv %s122
    %v124 = vadd.f32 %v120, %v123
    %v125 = vadd.f32 %v121, %v123
    %v126 = vstv %s102
    %vm127 = vcmp.gt.f32.partialorder %v124, %v126
    %vm128 = vcmp.gt.f32.partialorder %v125, %v126
    %v129 = vsel %vm127, %v124, 0.0
    %v130 = vsel %vm128, %v125, 0.0
    %v131 = vstv %s100
    %v132 = vmul.f32 %v129, %v131
    %v133 = vmul.f32 %v130, %v131
    %v134 = vadd.f32 %v118, %v132
    %v135 = vadd.f32 %v119, %v133
    %v136 = vld [vmem:[#allocation2] sm:$0xff]
    %v137 = vld [vmem:[#allocation2 + $0x8] sm:$0xff]
    %v138 = vadd.f32 %v136, %v134
    %v139 = vadd.f32 %v137, %v135
    %140 = vst [vmem:[#allocation2] sm:$0xff] %v138
    %141 = vst [vmem:[#allocation2 + $0x8] sm:$0xff] %v139
    // Predicated region
    $region18: #{berhu_loss.3} parent=1 // pred_check
      %p142 = pneg %p76
    $region19: #{berhu_loss.3} parent=1 // pred_check_branch
      %144 = sbr.rel (%p142) target = $region21
    $region20: #{berhu_loss.3} parent=1 // pred_region
      %v145 = vld [vmem:[#allocation2] sm:$0xff]
      %v146 = vld [vmem:[#allocation2 + $0x8] sm:$0xff]
      %v147 = vadd.f32 %v145, %v146
      %148 = vadd.xlane.f32.xlu0 %v147
      %v149 = vpop.xlane.xlu0 %148
      %v150 = vrot.slane %v149, 4
      %v151 = vadd.f32 %v149, %v150
      %v152 = vrot.slane %v151, 2
      %v153 = vadd.f32 %v151, %v152
      %v154 = vrot.slane %v153, 1
      %v155 = vadd.f32 %v153, %v154
      %s156 = vtos %v155
      %v157 = vstv %s156
      %vm158 = vcmask 0
      %159 = vst.msk [vmem:[#allocation4] sm:$0x1] %vm158, %v157
    $region21: #{berhu_loss.3} parent=1 // pred_fallthru
      _
    // Predicated region
    $region22: #{berhu_loss.3} parent=1 // pred_check
      _
    $region23: #{berhu_loss.3} parent=1 // pred_check_branch
      %161 = sbr.rel (0) target = $region25
    $region24: #{berhu_loss.3} parent=1 // pred_region
      %163 = vsyncadd [#allocation5], 0
      %s165 = sshll.u32 [#allocation4], 4
      %s166 = int_to_ptr.vmem [resolvable:$true] %s165
      %s167 = sshll.u32 %s3, 4
      %s168 = int_to_ptr.hbm [resolvable:$true] %s167
      %170 = dma.vmem_to_hbm [thread:$0]  %s166, 16, %s168, [#allocation5]
    $region25: #{berhu_loss.3} parent=1 // pred_fallthru
      _
    // Predicated region
    $region26: #{berhu_loss.3} parent=1 // pred_check
      _
    $region27: #{berhu_loss.3} parent=1 // pred_check_branch
      %172 = sbr.rel (0) target = $region29
    $region28: #{berhu_loss.3} parent=1 // pred_region
      %174 = dma.done [#allocation5], 16
    $region29: #{berhu_loss.3} parent=1 // pred_fallthru
      _
    %175 = vsyncpa [#allocation5], 1

// kernel: berhu_loss.2
$region0: #{berhu_loss.2}
  #allocation0 [shape = 'u32[]', space=smem, size = 0x4, offset = 0x4, fixed_abs, tag = 'smem constant byte address 0x4 - core index']
  #allocation1 [shape = 'u32[72,128]{1,0:T(1,128)}', space=vmem, size = 0x9000, scoped, tag = 'internal scratch']
  #allocation2 [shape = 'f32[8,256]{1,0:T(8,128)}', space=vmem, size = 0x2000, scoped, tag = 'scratch operand']
  #allocation3 [shape = 's32[8,256]{1,0:T(8,128)}', space=vmem, size = 0x2000, scoped, tag = 'scratch operand']
  %s0 = inlined_call_operand.vmem [shape: f32[8,256], index: 0, kind: input, shape index: {}]
  %s1 = inlined_call_operand.vmem [shape: f32[8,256], index: 1, kind: input, shape index: {}]
  %s2 = inlined_call_operand.hbm [shape: f32[1,1,1], index: 2, kind: output, shape index: {0}]
  %s3 = inlined_call_operand.hbm [shape: s32[1,1,1], index: 3, kind: output, shape index: {1}]
  %4 = xla_tuple %s2, %s3
  %s5 = sld [smem:[#allocation0]]
  $region34: #{berhu_loss.2} parent=0
    _
  %s7 = ssub.s32 1, %s5
  %s8 = scalar_select 0, %s7, %s5
  $region1: #{berhu_loss.2} parent=0
    #allocation4 [shape = 'u8[512]{0}', space=vmem, size = 0x400, scoped, tag = 'output window, operand 0, single buffered']
    #allocation5 [shape = 's32[1]{0}', space=sflag, size = 0x4, scoped, tag = 'scoped memory for berhu_loss.2']
    #allocation6 [shape = 'u8[512]{0}', space=vmem, size = 0x400, scoped, tag = 'output window, operand 1, single buffered']
    #allocation7 [shape = 's32[1]{0}', space=sflag, size = 0x4, scoped, tag = 'scoped memory for berhu_loss.2']
    %9 = vsyncpa [#allocation5], 0
    %10 = vsyncpa [#allocation7], 0
    // Predicated region
    $region2: #{berhu_loss.2} parent=1 // pred_check
      _
    $region3: #{berhu_loss.2} parent=1 // pred_check_branch
      %12 = sbr.rel (0) target = $region5
    $region4: #{berhu_loss.2} parent=1 // pred_region
      %s13 = sadd.s32 0, 0
      %p14 = scmp.lt.s32.totalorder %s13, 0
      %s15 = scalar_select %p14, %s13, 0
      %p16 = scmp.lt.s32.totalorder %s15, 0
      %s17 = scalar_select %p16, %s15, 0
      %s18 = smul.addr %s17, 2
      %s19 = smul.addr %s18, 8
      %s20 = scalar_lea.vmem %s0, %s19
      %s21 = sadd.s32 0, 0
      %p22 = scmp.lt.s32.totalorder %s21, 0
      %s23 = scalar_select %p22, %s21, 0
    $region5: #{berhu_loss.2} parent=1 // pred_fallthru
      _
    // Predicated region
    $region6: #{berhu_loss.2} parent=1 // pred_check
      _
    $region7: #{berhu_loss.2} parent=1 // pred_check_branch
      %25 = sbr.rel (0) target = $region9
    $region8: #{berhu_loss.2} parent=1 // pred_region
      %s26 = sadd.s32 0, 0
      %p27 = scmp.lt.s32.totalorder %s26, 0
      %s28 = scalar_select %p27, %s26, 0
      %p29 = scmp.lt.s32.totalorder %s28, 0
      %s30 = scalar_select %p29, %s28, 0
      %s31 = smul.addr %s30, 2
      %s32 = smul.addr %s31, 8
      %s33 = scalar_lea.vmem %s1, %s32
      %s34 = sadd.s32 0, 0
      %p35 = scmp.lt.s32.totalorder %s34, 0
      %s36 = scalar_select %p35, %s34, 0
    $region9: #{berhu_loss.2} parent=1 // pred_fallthru
      _
    %s37 = sadd.s32 0, 0
    %p38 = scmp.lt.s32.totalorder %s37, 0
    %s39 = scalar_select %p38, %s37, 0
    %p40 = scmp.lt.s32.totalorder %s39, 0
    %s41 = scalar_select %p40, %s39, 0
    %s42 = smul.addr %s41, 2
    %s43 = smul.addr %s42, 8
    %s44 = scalar_lea.vmem %s0, %s43
    %s45 = sadd.s32 0, 0
    %p46 = scmp.lt.s32.totalorder %s45, 0
    %s47 = scalar_select %p46, %s45, 0
    %p48 = scmp.lt.s32.totalorder %s47, 0
    %s49 = scalar_select %p48, %s47, 0
    %s50 = smul.addr %s49, 2
    %s51 = smul.addr %s50, 8
    %s52 = scalar_lea.vmem %s1, %s51
    %s53 = sadd.s32 0, 0
    %p54 = scmp.lt.s32.totalorder %s53, 0
    %s55 = scalar_select %p54, %s53, 0
    %p56 = scmp.lt.s32.totalorder %s55, 0
    %s57 = scalar_select %p56, %s55, 0
    %s58 = smul.addr %s57, 2
    %s59 = smul.addr %s58, 8
    %s60 = scalar_lea.vmem %s0, %s59
    %s61 = sadd.s32 0, 0
    %p62 = scmp.lt.s32.totalorder %s61, 0
    %s63 = scalar_select %p62, %s61, 0
    %s64 = sadd.s32 0, 0
    %p65 = scmp.lt.s32.totalorder %s64, 0
    %s66 = scalar_select %p65, %s64, 0
    %p67 = scmp.lt.s32.totalorder %s66, 0
    %s68 = scalar_select %p67, %s66, 0
    %s69 = smul.addr %s68, 2
    %s70 = smul.addr %s69, 8
    %s71 = scalar_lea.vmem %s1, %s70
    %s72 = sadd.s32 0, 0
    %p73 = scmp.lt.s32.totalorder %s72, 0
    %s74 = scalar_select %p73, %s72, 0
    %p75 = scmp.eq.s32.totalorder 0, 0
    // Predicated region
    $region10: #{berhu_loss.2} parent=1 // pred_check
      %p76 = pneg %p75
    $region11: #{berhu_loss.2} parent=1 // pred_check_branch
      %78 = sbr.rel (%p76) target = $region13
    $region12: #{berhu_loss.2} parent=1 // pred_region
      %79 = vst [vmem:[#allocation2] sm:$0xff] 0.0
      %80 = vst [vmem:[#allocation2 + $0x8] sm:$0xff] 0.0
      %81 = vst [vmem:[#allocation3] sm:$0xff] 0
      %82 = vst [vmem:[#allocation3 + $0x8] sm:$0xff] 0
    $region13: #{berhu_loss.2} parent=1 // pred_fallthru
      _
    %v83 = vld [vmem:[%s60] sm:$0xff]
    %v84 = vld [vmem:[%s60 + $0x8] sm:$0xff]
    %v85 = vld [vmem:[%s71] sm:$0xff]
    %v86 = vld [vmem:[%s71 + $0x8] sm:$0xff]
    %vm87 = vcmp.gt.f32.partialorder %v83, 0.0
    %vm88 = vcmp.gt.f32.partialorder %v84, 0.0
    %v89 = vsub.f32 %v83, %v85
    %v90 = vsub.f32 %v84, %v86
    %v91 = vand.u32 2147483647, %v89
    %v92 = vand.u32 2147483647, %v90
    %v93 = vsel %vm87, %v91, 0.0
    %v94 = vsel %vm88, %v92, 0.0
    %v95 = vsel %vm87, 1, 0
    %v96 = vsel %vm88, 1, 0
    %v97 = vld [vmem:[#allocation2] sm:$0xff]
    %v98 = vld [vmem:[#allocation2 + $0x8] sm:$0xff]
    %v99 = vmax.f32 %v97, %v93
    %v100 = vmax.f32 %v98, %v94
    %101 = vst [vmem:[#allocation2] sm:$0xff] %v99
    %102 = vst [vmem:[#allocation2 + $0x8] sm:$0xff] %v100
    %v103 = vld [vmem:[#allocation3] sm:$0xff]
    %v104 = vld [vmem:[#allocation3 + $0x8] sm:$0xff]
    %v105 = vadd.s32 %v103, %v95
    %v106 = vadd.s32 %v104, %v96
    %107 = vst [vmem:[#allocation3] sm:$0xff] %v105
    %108 = vst [vmem:[#allocation3 + $0x8] sm:$0xff] %v106
    // Predicated region
    $region14: #{berhu_loss.2} parent=1 // pred_check
      %p109 = pneg %p75
    $region15: #{berhu_loss.2} parent=1 // pred_check_branch
      %111 = sbr.rel (%p109) target = $region17
    $region16: #{berhu_loss.2} parent=1 // pred_region
      %v112 = vld [vmem:[#allocation2] sm:$0xff]
      %v113 = vld [vmem:[#allocation2 + $0x8] sm:$0xff]
      %v114 = vmax.f32 %v112, %v113
      %115 = vmax.xlane.f32.xlu0 %v114
      %v116 = vpop.xlane.xlu0 %115
      %v117 = vrot.slane %v116, 4
      %v118 = vmax.f32 %v116, %v117
      %v119 = vrot.slane %v118, 2
      %v120 = vmax.f32 %v118, %v119
      %v121 = vrot.slane %v120, 1
      %v122 = vmax.f32 %v120, %v121
      %s123 = vtos %v122
      %v124 = vstv %s123
      %vm125 = vcmask 0
      %126 = vst.msk [vmem:[#allocation4] sm:$0x1] %vm125, %v124
      %v127 = vld [vmem:[#allocation3] sm:$0xff]
      %v128 = vld [vmem:[#allocation3 + $0x8] sm:$0xff]
      %v129 = vadd.s32 %v127, %v128
      %v130 = vand.u32 %v129, 65535
      %v131 = vshrl.u32 %v129, 16
      %v132 = vcvt.s32.f32 %v130
      %v133 = vcvt.s32.f32 %v131
      %134 = vadd.xlane.f32.xlu0 %v132
      %v135 = vpop.xlane.xlu0 %134
      %136 = vadd.xlane.f32.xlu0 %v133
      %v137 = vpop.xlane.xlu0 %136
      %v138 = vcvt.f32.s32 %v135
      %v139 = vcvt.f32.s32 %v137
      %v140 = vshll.u32 %v139, 16
      %v141 = vadd.s32 %v140, %v138
      %v142 = vrot.slane %v141, 4
      %v143 = vadd.s32 %v141, %v142
      %v144 = vrot.slane %v143, 2
      %v145 = vadd.s32 %v143, %v144
      %v146 = vrot.slane %v145, 1
      %v147 = vadd.s32 %v145, %v146
      %s148 = vtos %v147
      %v149 = vstv %s148
      %150 = vst.msk [vmem:[#allocation6] sm:$0x1] %vm125, %v149
    $region17: #{berhu_loss.2} parent=1 // pred_fallthru
      _
    // Predicated region
    $region18: #{berhu_loss.2} parent=1 // pred_check
      _
    $region19: #{berhu_loss.2} parent=1 // pred_check_branch
      %152 = sbr.rel (0) target = $region21
    $region20: #{berhu_loss.2} parent=1 // pred_region
      %154 = vsyncadd [#allocation5], 0
      %s156 = sshll.u32 [#allocation4], 4
      %s157 = int_to_ptr.vmem [resolvable:$true] %s156
      %s158 = sshll.u32 %s2, 4
      %s159 = int_to_ptr.hbm [resolvable:$true] %s158
      %161 = dma.vmem_to_hbm [thread:$0]  %s157, 16, %s159, [#allocation5]
    $region21: #{berhu_loss.2} parent=1 // pred_fallthru
      _
    // Predicated region
    $region22: #{berhu_loss.2} parent=1 // pred_check
      _
    $region23: #{berhu_loss.2} parent=1 // pred_check_branch
      %163 = sbr.rel (0) target = $region25
    $region24: #{berhu_loss.2} parent=1 // pred_region
      %165 = vsyncadd [#allocation7], 0
      %s167 = sshll.u32 [#allocation6], 4
      %s168 = int_to_ptr.vmem [resolvable:$true] %s167
      %s169 = sshll.u32 %s3, 4
      %s170 = int_to_ptr.hbm [resolvable:$true] %s169
      %172 = dma.vmem_to_hbm [thread:$0]  %s168, 16, %s170, [#allocation7]
    $region25: #{berhu_loss.2} parent=1 // pred_fallthru
      _
    // Predicated region
    $region26: #{berhu_loss.2} parent=1 // pred_check
      _
    $region27: #{berhu_loss.2} parent=1 // pred_check_branch
      %174 = sbr.rel (0) target = $region29
    $region28: #{berhu_loss.2} parent=1 // pred_region
      %176 = dma.done [#allocation5], 16
    $region29: #{berhu_loss.2} parent=1 // pred_fallthru
      _
    // Predicated region
    $region30: #{berhu_loss.2} parent=1 // pred_check
      _
    $region31: #{berhu_loss.2} parent=1 // pred_check_branch
      %178 = sbr.rel (0) target = $region33
    $region32: #{berhu_loss.2} parent=1 // pred_region
      %180 = dma.done [#allocation7], 16
    $region33: #{berhu_loss.2} parent=1 // pred_fallthru
      _
    %181 = vsyncpa [#allocation5], 1
    %182 = vsyncpa [#allocation7], 1

</llo_original>
